<compile_context>
chip_gen: v7x
topology: tpu7x:2x2x1
jax: 0.10.0
libtpu: 0.0.40
codegen_flags: <defaults>
</compile_context>

<pallas_src>
import math
from functools import partial

import jax
import jax.numpy as jnp
from jax import lax
from jax.experimental import pallas as pl
from jax.experimental.pallas import tpu as pltpu

_LANE = 128
_SUBLANE = 8
# Elements per input block (~2 MiB at 4 B/elem); double-buffered ~4 MiB.
_BLOCK_ELEMS = 512 * 1024


def _all_mid_kernel(x_ref, o_ref, *, r_total, r_tile):
    """'all' over the middle (sublane) axis of a (1, TR, TPOST) tile."""
    k = pl.program_id(2)                       # reduction-axis grid position (last)
    truthy = x_ref[...] != 0                   # truthiness on the native dtype
    if r_total % r_tile != 0:
        # Neutralize garbage rows of the padded tail R-block (True is neutral for AND).
        ridx = k * r_tile + lax.broadcasted_iota(jnp.int32, truthy.shape, 1)
        truthy = jnp.logical_or(truthy, ridx >= r_total)
    mask = truthy.astype(jnp.int32)
    partial_all = jnp.min(mask, axis=1, keepdims=True)      # (1, 1, TPOST)

    @pl.when(k == 0)
    def _():
        o_ref[...] = partial_all

    @pl.when(k > 0)
    def _():
        o_ref[...] = jnp.minimum(o_ref[...], partial_all)


def _all_last_kernel(x_ref, o_ref, *, r_total, r_tile):
    """'all' over the last (lane) axis of a (TN, TR) tile (reducing the trailing dim)."""
    k = pl.program_id(1)
    truthy = x_ref[...] != 0
    if r_total % r_tile != 0:
        ridx = k * r_tile + lax.broadcasted_iota(jnp.int32, truthy.shape, 1)
        truthy = jnp.logical_or(truthy, ridx >= r_total)
    mask = truthy.astype(jnp.int32)
    partial_all = jnp.min(mask, axis=1, keepdims=True)       # (TN, 1)

    @pl.when(k == 0)
    def _():
        o_ref[...] = partial_all

    @pl.when(k > 0)
    def _():
        o_ref[...] = jnp.minimum(o_ref[...], partial_all)


def aten_all_pallas(x, dim, keepdim=None):
    """Reproduces torch.all(x, dim=dim) / torch.all(x, dim=dim, keepdim=keepdim)."""
    nd = x.ndim
    d = dim % nd
    shape = x.shape
    pre = math.prod(shape[:d]) if d > 0 else 1
    R = shape[d]
    post = math.prod(shape[d + 1:]) if d + 1 < nd else 1
    out_shape_nokeep = shape[:d] + shape[d + 1:]

    cparams = lambda sem: pltpu.CompilerParams(   # noqa: E731
        dimension_semantics=sem,
        vmem_limit_bytes=32 * 1024 * 1024,
    )

    if post > 1:
        # Primary path: (pre, R, post); reduce the middle (sublane) axis, keep the
        # trailing axes dense on lanes -> lane-dense output blocks.
        x3 = x.reshape(pre, R, post)                     # free contiguous reshape

        t_post = post if post <= 4 * _LANE else 4 * _LANE            # full or 512 lanes
        max_r = max(_SUBLANE, (_BLOCK_ELEMS // t_post) // _SUBLANE * _SUBLANE)
        t_r = R if R <= max_r else max_r                              # full R or 8-multiple

        grid = (pre, pl.cdiv(post, t_post), pl.cdiv(R, t_r))
        out = pl.pallas_call(
            partial(_all_mid_kernel, r_total=R, r_tile=t_r),
            out_shape=jax.ShapeDtypeStruct((pre, 1, post), jnp.int32),
            grid=grid,
            in_specs=[pl.BlockSpec((1, t_r, t_post), lambda i, j, k: (i, k, j))],
            out_specs=pl.BlockSpec((1, 1, t_post), lambda i, j, k: (i, 0, j)),
            compiler_params=cparams(("parallel", "parallel", "arbitrary")),
        )(x3)
    else:
        # Trailing-axis reduction: (N, R) with R dense on lanes; output is (N, 1)
        # (tiny -> masked stores are irrelevant here).
        N = pre
        x2 = x.reshape(N, R)                              # free contiguous reshape

        t_r = R if R <= 8 * _LANE else 8 * _LANE          # full R or 1024 lanes
        t_n = N if N < 256 else 256                       # full N or 8-multiple

        grid = (pl.cdiv(N, t_n), pl.cdiv(R, t_r))
        out = pl.pallas_call(
            partial(_all_last_kernel, r_total=R, r_tile=t_r),
            out_shape=jax.ShapeDtypeStruct((N, 1), jnp.int32),
            grid=grid,
            in_specs=[pl.BlockSpec((t_n, t_r), lambda i, k: (i, k))],
            out_specs=pl.BlockSpec((t_n, 1), lambda i, k: (i, 0)),
            compiler_params=cparams(("parallel", "arbitrary")),
        )(x2)

    res = out.reshape(out_shape_nokeep).astype(jnp.bool_)   # output is tiny
    if keepdim:
        res = jnp.expand_dims(res, d)
    # keepdim None / False -> reduced dim removed (matches torch default)
    return res


if __name__ == "__main__":
    key = jax.random.PRNGKey(0)

    # Module config under test: aten_all(dim=1, keepdim=False)
    dim, keepdim = 1, False
    x = jax.random.randint(key, (2, 4, 16, 16), minval=0, maxval=2, dtype=jnp.int32)

    y = aten_all_pallas(x, dim, keepdim)
    y = jax.block_until_ready(y)
    ref = jnp.all(x != 0, axis=dim, keepdims=bool(keepdim))
    assert y.shape == ref.shape, (y.shape, ref.shape)
    assert y.dtype == jnp.bool_
    assert bool(jnp.array_equal(y, ref))

    # Extra check: float input (0.0 / 0.5 / NaN are tested on native dtype), keepdim=True.
    xf = x.astype(jnp.float32) * 0.5
    xf = xf.at[0, 0, 0, 0].set(jnp.nan)          # NaN is truthy, like torch
    yf = jax.block_until_ready(aten_all_pallas(xf, 1, True))
    reff = jnp.all(xf != 0, axis=1, keepdims=True)
    assert yf.shape == reff.shape and bool(jnp.array_equal(yf, reff))

    # Extra check: reduce the trailing axis (lane-reduce path), negative dim.
    yl = jax.block_until_ready(aten_all_pallas(x, -1, False))
    refl = jnp.all(x != 0, axis=-1)
    assert yl.shape == refl.shape and bool(jnp.array_equal(yl, refl))

    print("KERNEL_OK")
</pallas_src>

<mosaic_0001>
module attributes {stable_mosaic.version = 11 : i64} {
  func.func @_all_mid_kernel(%arg0: i32, %arg1: i32, %arg2: i32, %arg3: memref<1x4x256xi32, #tpu.memory_space<vmem>>, %arg4: memref<1x1x256xi32, #tpu.memory_space<vmem>>) attributes {dimension_semantics = [#tpu.dimension_semantics<parallel>, #tpu.dimension_semantics<parallel>, #tpu.dimension_semantics<arbitrary>], iteration_bounds = array<i64: 2, 1, 1>, scalar_prefetch = 0 : i64, scratch_operands = 0 : i64, tpu.core_type = #tpu.core_type<tc>, window_params = [{transform_indices = @transform_0, window_bounds = array<i64: 1, 4, 256>}, {transform_indices = @transform_1, window_bounds = array<i64: 1, 1, 256>}]} {
    %c0 = arith.constant 0 : index
    %c0_0 = arith.constant 0 : index
    %c0_1 = arith.constant 0 : index
    %0 = vector.load %arg3[%c0, %c0_0, %c0_1] : memref<1x4x256xi32, #tpu.memory_space<vmem>>, vector<1x4x256xi32>
    %c0_i32 = arith.constant 0 : i32
    %1 = vector.broadcast %c0_i32 : i32 to vector<1x4x256xi32>
    %2 = arith.cmpi ne, %0, %1 : vector<1x4x256xi32>
    %3 = arith.extui %2 : vector<1x4x256xi1> to vector<1x4x256xi32>
    %cst = arith.constant dense<2147483647> : vector<1x256xi32>
    %4 = vector.multi_reduction <minsi>, %3, %cst [1] : vector<1x4x256xi32> to vector<1x256xi32>
    %5 = vector.shape_cast %4 : vector<1x256xi32> to vector<1x1x256xi32>
    %c0_i32_2 = arith.constant 0 : i32
    %6 = arith.cmpi eq, %arg2, %c0_i32_2 : i32
    %7 = arith.extui %6 : i1 to i32
    %c0_i32_3 = arith.constant 0 : i32
    %8 = arith.cmpi ne, %7, %c0_i32_3 : i32
    scf.if %8 {
      %c0_6 = arith.constant 0 : index
      %c0_7 = arith.constant 0 : index
      %c0_8 = arith.constant 0 : index
      %12 = vector.load %arg4[%c0_6, %c0_7, %c0_8] : memref<1x1x256xi32, #tpu.memory_space<vmem>>, vector<1x1x256xi32>
      tpu.vector_store %arg4[%c0_6, %c0_7, %c0_8], %5 {strides = array<i32>} : memref<1x1x256xi32, #tpu.memory_space<vmem>>, vector<1x1x256xi32>,
    } else {
    }
    %c0_i32_4 = arith.constant 0 : i32
    %9 = arith.cmpi sgt, %arg2, %c0_i32_4 : i32
    %10 = arith.extui %9 : i1 to i32
    %c0_i32_5 = arith.constant 0 : i32
    %11 = arith.cmpi ne, %10, %c0_i32_5 : i32
    scf.if %11 {
      %c0_6 = arith.constant 0 : index
      %c0_7 = arith.constant 0 : index
      %c0_8 = arith.constant 0 : index
      %12 = vector.load %arg4[%c0_6, %c0_7, %c0_8] : memref<1x1x256xi32, #tpu.memory_space<vmem>>, vector<1x1x256xi32>
      %13 = arith.minsi %12, %5 : vector<1x1x256xi32>
      %c0_9 = arith.constant 0 : index
      %c0_10 = arith.constant 0 : index
      %c0_11 = arith.constant 0 : index
      %14 = vector.load %arg4[%c0_9, %c0_10, %c0_11] : memref<1x1x256xi32, #tpu.memory_space<vmem>>, vector<1x1x256xi32>
      tpu.vector_store %arg4[%c0_9, %c0_10, %c0_11], %13 {strides = array<i32>} : memref<1x1x256xi32, #tpu.memory_space<vmem>>, vector<1x1x256xi32>,
    } else {
    }
    return
  }
  func.func @transform_0(%arg0: i32, %arg1: i32, %arg2: i32) -> (i32, i32, i32) {
    %c0_i32 = arith.constant 0 : i32
    return %arg0, %arg2, %arg1 : i32, i32, i32
  }
  func.func @transform_1(%arg0: i32, %arg1: i32, %arg2: i32) -> (i32, i32, i32) {
    %c0_i32 = arith.constant 0 : i32
    %c0_i32_0 = arith.constant 0 : i32
    return %arg0, %c0_i32, %arg1 : i32, i32, i32
  }
}

</mosaic_0001>

<llo_original>
// kernel: tpu_custom_call.1
$region0: #{tpu_custom_call.1}
  #allocation0 [shape = 'u32[]', space=smem, size = 0x4, offset = 0x4, fixed_abs, tag = 'smem constant byte address 0x4 - core index']
  #allocation1 [shape = 'u32[144,128]{1,0:T(1,128)}', space=vmem, size = 0x12000, scoped, tag = 'internal scratch']
  %s0 = inlined_call_operand.hbm [shape: s32[2,4,256], index: 0, kind: input, shape index: {}]
  %s1 = inlined_call_operand.hbm [shape: s32[2,1,256], index: 1, kind: output, shape index: {}]
  %s2 = sld [smem:[#allocation0]]
  $region49: #{tpu_custom_call.1} parent=0
    _
  %s4 = ssub.s32 1, %s2
  %s5 = scalar_select 0, %s4, %s2
  $region1: #{tpu_custom_call.1} parent=0
    #allocation2 [shape = 'u8[8192]{0}', space=vmem, size = 0x2000, scoped, tag = 'input window, operand 0']
    #allocation3 [shape = 's32[2]{0}', space=sflag, size = 0x8, scoped, tag = 'scoped memory for tpu_custom_call.1']
    #allocation4 [shape = 's32[2]{0}', space=sflag, size = 0x8, scoped, tag = 'scoped memory for tpu_custom_call.1']
    #allocation5 [shape = 'u8[2048]{0}', space=vmem, size = 0x800, scoped, tag = 'output window, operand 0']
    %6 = vsyncpa [#allocation3], 0
    %s7 = scalar_lea.sflag [#allocation3], 1
    %8 = vsyncpa %s7, 0
    %9 = vsyncpa [#allocation4], 0
    %s10 = scalar_lea.sflag [#allocation4], 1
    %11 = vsyncpa %s10, 0
    loop: start=0, step=1, limit=4
    $region2: #{tpu_custom_call.1} parent=1 // loop_pre_header
      _
    $region3: #{tpu_custom_call.1} parent=1 // loop_header
      %s13 = sphi 0, %s17
      %p14 = scmp.ge.s32.totalorder %s13, 4
      %s20 = sphi 0, %s39
      %s21 = sphi 0, %s35
      %s22 = sphi 0, %s31
      %s23 = sphi 0, %s20
      %s24 = sphi 0, %s21
      %s25 = sphi 0, %s22
      %s26 = sphi 0, %s23
      %s27 = sphi 0, %s24
      %s28 = sphi 0, %s25
      %s46 = sphi 0, %s48
      %s49 = sphi 0, %s46
      %s50 = sphi 0, %s49
      %s66 = sphi 0, %s50
      %s74 = sphi 0, %s76
      %s77 = sphi 0, %s74
      %s78 = sphi 0, %s77
      %s94 = sphi 0, %s78
    $region4: #{tpu_custom_call.1} parent=1 // loop_header_branch
      %16 = sbr.rel (%p14) target = $region8
    $region5: #{tpu_custom_call.1} parent=1 // loop_body
      %s18 = ssub.s32 %s13, 1
      %s19 = ssub.s32 %s13, 2
      %s29 = sadd.s32 1, %s22
      %p30 = scmp.ge.s32.totalorder %s29, 1
      %s31 = scalar_select %p30, 0, %s29
      %s32 = sadd.s32 1, %s21
      %s33 = scalar_select %p30, %s32, %s21
      %p34 = scmp.ge.s32.totalorder %s33, 1
      %s35 = scalar_select %p34, 0, %s33
      %s36 = sadd.s32 1, %s20
      %s37 = scalar_select %p34, %s36, %s20
      %p38 = scmp.ge.s32.totalorder %s37, 2
      %s39 = scalar_select %p38, 0, %s37
      %s40 = ssub.s32 %s20, %s39
      %s41 = ssub.s32 %s22, %s31
      %s42 = sor.u32 %s40, %s41
      %s43 = ssub.s32 %s21, %s35
      %s44 = sor.u32 %s42, %s43
      %p45 = scmp.eq.s32.totalorder %s44, 0
      %s47 = sadd.s32 %s46, 1
      %s48 = scalar_select %p45, %s46, %s47
      %p51 = pneg %p45
      %p52 = scmp.eq.s32.totalorder %s13, 1
      %p53 = por %p51, %p52
      %p54 = scmp.ne.s32.totalorder %s46, %s49
      %p55 = scmp.eq.s32.totalorder %s13, 0
      %p56 = por %p54, %p55
      %p57 = scmp.ne.s32.totalorder %s46, %s49
      %p58 = scmp.eq.s32.totalorder %s18, 1
      %p59 = por %p57, %p58
      %p60 = scmp.ne.s32.totalorder %s49, %s50
      %p61 = scmp.eq.s32.totalorder %s18, 0
      %p62 = por %p60, %p61
      %p63 = scmp.ne.s32.totalorder %s49, %s50
      %p64 = scmp.eq.s32.totalorder %s19, 1
      %p65 = por %p63, %p64
      %p67 = scmp.ne.s32.totalorder %s50, %s66
      %p68 = scmp.eq.s32.totalorder %s19, 0
      %p69 = por %p67, %p68
      %s70 = ssub.s32 %s20, %s39
      %s71 = ssub.s32 %s21, %s35
      %s72 = sor.u32 %s70, %s71
      %p73 = scmp.eq.s32.totalorder %s72, 0
      %s75 = sadd.s32 %s74, 1
      %s76 = scalar_select %p73, %s74, %s75
      %p79 = pneg %p73
      %p80 = scmp.eq.s32.totalorder %s13, 1
      %p81 = por %p79, %p80
      %p82 = scmp.ne.s32.totalorder %s74, %s77
      %p83 = scmp.eq.s32.totalorder %s13, 0
      %p84 = por %p82, %p83
      %p85 = scmp.ne.s32.totalorder %s74, %s77
      %p86 = scmp.eq.s32.totalorder %s18, 1
      %p87 = por %p85, %p86
      %p88 = scmp.ne.s32.totalorder %s77, %s78
      %p89 = scmp.eq.s32.totalorder %s18, 0
      %p90 = por %p88, %p89
      %p91 = scmp.ne.s32.totalorder %s77, %s78
      %p92 = scmp.eq.s32.totalorder %s19, 1
      %p93 = por %p91, %p92
      %p95 = scmp.ne.s32.totalorder %s78, %s94
      %p96 = scmp.eq.s32.totalorder %s19, 0
      %p97 = por %p95, %p96
      %p98 = scmp.le.s32.totalorder 1, %s13
      %p99 = scmp.lt.s32.totalorder %s13, 3
      %p100 = pnand %p98, %p99
      %p101 = pneg %p100
      // Predicated region
      $region9: #{tpu_custom_call.1} parent=5 // pred_check
        _
      $region10: #{tpu_custom_call.1} parent=5 // pred_check_branch
        %103 = sbr.rel (%p100) target = $region12
      $region11: #{tpu_custom_call.1} parent=5 // pred_region
        %s104 = ssub.s32 %s13, 1
      $region12: #{tpu_custom_call.1} parent=5 // pred_fallthru
        _
      %p105 = scmp.lt.s32.totalorder %s13, 2
      // Predicated region
      $region13: #{tpu_custom_call.1} parent=5 // pred_check
        %p106 = pneg %p105
      $region14: #{tpu_custom_call.1} parent=5 // pred_check_branch
        %108 = sbr.rel (%p106) target = $region16
      $region15: #{tpu_custom_call.1} parent=5 // pred_region
        // Predicated region
        $region17: #{tpu_custom_call.1} parent=15 // pred_check
          %p109 = pneg %p56
        $region18: #{tpu_custom_call.1} parent=15 // pred_check_branch
          %111 = sbr.rel (%p109) target = $region20
        $region19: #{tpu_custom_call.1} parent=15 // pred_region
          %s112 = sand.u32 %s46, 1
          %s113 = scalar_lea.sflag [#allocation3], %s112
          %s114 = sand.u32 %s46, 1
          %s115 = smul.addr %s114, 8
          %s116 = scalar_lea.vmem [#allocation2], %s115
          %s117 = smul.u32 2, %s21
          %s119 = ssub.s32 128, 128
          %120 = vsyncadd %s113, %s119
          %s121 = smul.addr %s22, 2
          %s122 = sadd.s32 %s117, %s121
          %s123 = smul.addr %s20, 2
          %s124 = sadd.s32 %s122, %s123
          %s125 = smul.addr %s124, 64
          %s126 = scalar_lea.hbm %s0, %s125
          %s128 = sshll.u32 %s116, 4
          %s129 = int_to_ptr.vmem [resolvable:$true] %s128
          %131 = dma.hbm_to_vmem [thread:$0]  %s126, 128, %s129, %s113
        $region20: #{tpu_custom_call.1} parent=15 // pred_fallthru
          _
      $region16: #{tpu_custom_call.1} parent=5 // pred_fallthru
        _
      %p132 = scmp.le.s32.totalorder 1, %s13
      %p133 = scmp.lt.s32.totalorder %s13, 3
      %p134 = pnand %p132, %p133
      %p135 = pneg %p134
      // Predicated region
      $region21: #{tpu_custom_call.1} parent=5 // pred_check
        _
      $region22: #{tpu_custom_call.1} parent=5 // pred_check_branch
        %137 = sbr.rel (%p134) target = $region24
      $region23: #{tpu_custom_call.1} parent=5 // pred_region
        %s138 = ssub.s32 %s13, 1
        %s139 = sand.u32 %s49, 1
        %s140 = scalar_lea.sflag [#allocation3], %s139
        %s141 = sand.u32 %s49, 1
        %s142 = smul.addr %s141, 8
        %s143 = scalar_lea.vmem [#allocation2], %s142
        // Predicated region
        $region25: #{tpu_custom_call.1} parent=23 // pred_check
          %p144 = pneg %p62
        $region26: #{tpu_custom_call.1} parent=23 // pred_check_branch
          %146 = sbr.rel (%p144) target = $region28
        $region27: #{tpu_custom_call.1} parent=23 // pred_region
          %147 = dma.done %s140, 128
        $region28: #{tpu_custom_call.1} parent=23 // pred_fallthru
          _
        %s148 = sand.u32 %s49, 1
        %s149 = scalar_lea.sflag [#allocation3], %s148
        %s150 = sand.u32 %s49, 1
        %s151 = smul.addr %s150, 8
        %s152 = scalar_lea.vmem [#allocation2], %s151
        %p153 = pneg %p62
        %p154 = pneg %p59
        %p155 = pneg %p90
        %p156 = pneg %p87
        %s157 = sand.u32 %s77, 1
        %s158 = scalar_lea.sflag [#allocation4], %s157
        %s159 = sand.u32 %s77, 1
        %s160 = smul.addr %s159, 2
        %s161 = scalar_lea.vmem [#allocation5], %s160
        %s162 = smul.u32 2, %s24
        %s163 = smul.u32 2, %s24
        %v164 = vld [vmem:[%s143] sm:$0xff]
        %vm165 = vcmp.ne.s32.totalorder %v164, 0
        %v166 = vsel %vm165, 1, 0
        %v167 = vcombine.high %v166, %v166
        %vm168 = vcmask 1043456
        %v169 = vsel %vm168, %v166, 2147483647
        %v170 = vrot.slane %v169, 4
        %vm171 = vcmp.lt.s32.totalorder %v169, %v170
        %v172 = vsel %vm171, %v169, %v170
        %v173 = vrot.slane %v172, 2
        %vm174 = vcmp.lt.s32.totalorder %v172, %v173
        %v175 = vsel %vm174, %v172, %v173
        %v176 = vrot.slane %v175, 1
        %vm177 = vcmp.lt.s32.totalorder %v175, %v176
        %v178 = vsel %vm177, %v175, %v176
        %v179 = vsel %vm168, %v167, 2147483647
        %v180 = vrot.slane %v179, 4
        %vm181 = vcmp.lt.s32.totalorder %v179, %v180
        %v182 = vsel %vm181, %v179, %v180
        %v183 = vrot.slane %v182, 2
        %vm184 = vcmp.lt.s32.totalorder %v182, %v183
        %v185 = vsel %vm184, %v182, %v183
        %v186 = vrot.slane %v185, 1
        %vm187 = vcmp.lt.s32.totalorder %v185, %v186
        %v188 = vsel %vm187, %v185, %v186
        %p189 = scmp.eq.s32.totalorder %s25, 0
        // Predicated region
        $region29: #{tpu_custom_call.1} parent=23 // pred_check
          %p190 = pneg %p189
        $region30: #{tpu_custom_call.1} parent=23 // pred_check_branch
          %192 = sbr.rel (%p190) target = $region32
        $region31: #{tpu_custom_call.1} parent=23 // pred_region
          %v193 = vcombine.low %v178, %v188
          %v195 = vunpack.c.l.s4 1966171168
          %v196 = vunpack.c.0.s8 %v195
          %v197 = vlaneseq
          %v198 = vshrl.u32 %v197, 7
          %v199 = vsub.s32 %v196, %v198
          %v200 = vrot.slane %v193, %v199
          %v202 = vunpack.c.l.s4 1966171168
          %v203 = vunpack.c.0.s8 %v202
          %v204 = vlaneseq
          %v205 = vshrl.u32 %v204, 7
          %v206 = vsub.s32 %v203, %v205
          %v207 = vrot.slane %v200, %v206
          %v208 = vlaneseq
          %vm209 = vcmp.ge.s32.totalorder %v208, 0
          %vm210 = vcmp.lt.s32.totalorder %v208, 256
          %vm211 = vmand %vm209, %vm210
          %212 = vst.msk [vmem:[%s161] sm:$0x3] %vm211, %v207
        $region32: #{tpu_custom_call.1} parent=23 // pred_fallthru
          _
        %p213 = scmp.gt.s32.totalorder %s25, 0
        // Predicated region
        $region33: #{tpu_custom_call.1} parent=23 // pred_check
          %p214 = pneg %p213
        $region34: #{tpu_custom_call.1} parent=23 // pred_check_branch
          %216 = sbr.rel (%p214) target = $region36
        $region35: #{tpu_custom_call.1} parent=23 // pred_region
          %v217 = vld [vmem:[%s161] sm:$0x3]
          %v218 = vcombine.low %v178, %v188
          %v220 = vunpack.c.l.s4 1966171168
          %v221 = vunpack.c.0.s8 %v220
          %v222 = vlaneseq
          %v223 = vshrl.u32 %v222, 7
          %v224 = vsub.s32 %v221, %v223
          %v225 = vrot.slane %v218, %v224
          %v227 = vunpack.c.l.s4 1966171168
          %v228 = vunpack.c.0.s8 %v227
          %v229 = vlaneseq
          %v230 = vshrl.u32 %v229, 7
          %v231 = vsub.s32 %v228, %v230
          %v232 = vrot.slane %v225, %v231
          %vm233 = vcmp.lt.s32.totalorder %v217, %v232
          %v234 = vsel %vm233, %v217, %v232
          %v235 = vlaneseq
          %vm236 = vcmp.ge.s32.totalorder %v235, 0
          %vm237 = vcmp.lt.s32.totalorder %v235, 256
          %vm238 = vmand %vm236, %vm237
          %239 = vst.msk [vmem:[%s161] sm:$0x3] %vm238, %v234
        $region36: #{tpu_custom_call.1} parent=23 // pred_fallthru
          _
        %s240 = sand.u32 %s77, 1
        %s241 = scalar_lea.sflag [#allocation4], %s240
        %s242 = sand.u32 %s77, 1
        %s243 = smul.addr %s242, 2
        %s244 = scalar_lea.vmem [#allocation5], %s243
        // Predicated region
        $region37: #{tpu_custom_call.1} parent=23 // pred_check
          %p245 = pneg %p87
        $region38: #{tpu_custom_call.1} parent=23 // pred_check_branch
          %247 = sbr.rel (%p245) target = $region40
        $region39: #{tpu_custom_call.1} parent=23 // pred_region
          %s248 = smul.u32 2, %s24
          %s250 = ssub.s32 32, 32
          %251 = vsyncadd %s241, %s250
          %s252 = smul.addr %s23, 2
          %s253 = sadd.s32 %s248, %s252
          %s254 = smul.addr %s253, 16
          %s255 = scalar_lea.hbm %s1, %s254
          %s257 = sshll.u32 %s244, 4
          %s258 = int_to_ptr.vmem [resolvable:$true] %s257
          %260 = dma.vmem_to_hbm [thread:$0]  %s258, 32, %s255, %s241
        $region40: #{tpu_custom_call.1} parent=23 // pred_fallthru
          _
      $region24: #{tpu_custom_call.1} parent=5 // pred_fallthru
        _
      %p261 = scmp.le.s32.totalorder 2, %s13
      // Predicated region
      $region41: #{tpu_custom_call.1} parent=5 // pred_check
        %p262 = pneg %p261
      $region42: #{tpu_custom_call.1} parent=5 // pred_check_branch
        %264 = sbr.rel (%p262) target = $region44
      $region43: #{tpu_custom_call.1} parent=5 // pred_region
        %s265 = ssub.s32 %s13, 2
        // Predicated region
        $region45: #{tpu_custom_call.1} parent=43 // pred_check
          %p266 = pneg %p93
        $region46: #{tpu_custom_call.1} parent=43 // pred_check_branch
          %268 = sbr.rel (%p266) target = $region48
        $region47: #{tpu_custom_call.1} parent=43 // pred_region
          %s269 = sand.u32 %s78, 1
          %s270 = scalar_lea.sflag [#allocation4], %s269
          %s271 = sand.u32 %s78, 1
          %s272 = smul.addr %s271, 2
          %s273 = scalar_lea.vmem [#allocation5], %s272
          %274 = dma.done %s270, 32
        $region48: #{tpu_custom_call.1} parent=43 // pred_fallthru
          _
      $region44: #{tpu_custom_call.1} parent=5 // pred_fallthru
        _
    $region6: #{tpu_custom_call.1} parent=1 // loop_footer
      %s17 = sadd.s32 1, %s13
    $region7: #{tpu_custom_call.1} parent=1 // loop_footer_branch
      %12 = sbr.rel target = $region3
    $region8: #{tpu_custom_call.1} parent=1 // loop_exit
      _
    %275 = vsyncpa [#allocation3], 1
    %s276 = scalar_lea.sflag [#allocation3], 1
    %277 = vsyncpa %s276, 1
    %278 = vsyncpa [#allocation4], 1
    %s279 = scalar_lea.sflag [#allocation4], 1
    %280 = vsyncpa %s279, 1

</llo_original>
